<compile_context>
chip_gen: v7x
topology: tpu7x:2x2x1
jax: 0.10.0
libtpu: 0.0.40
codegen_flags: <defaults>
</compile_context>

<pallas_src>
import jax
import jax.numpy as jnp
from jax.experimental import pallas as pl
from jax.experimental.pallas import tpu as pltpu

INV_SQRT2 = 0.7071067811865476


def _gelu_exact(t):
    # PyTorch nn.GELU() default: 0.5 * x * (1 + erf(x / sqrt(2)))
    return 0.5 * t * (1.0 + jax.lax.erf(t * INV_SQRT2))


# ----------------------------------------------------------------------------
# Kernel factory. Refs:
#   xt_ref : (C, TD [+K-1 if host_halo]) activation tile
#   ws_ref : (3, C, C) fused weight stack
#   vt_ref : (C, K+3)  dw taps + 3 fused bias columns
#   o_ref  : (C, TD)   output tile
#   xw_ref : (C, TD+K-1) VMEM scratch (only in the no-host-halo path)
# ----------------------------------------------------------------------------
def make_block_kernel(K, TD, host_halo):
    P = (K - 1) // 2

    def conv_and_ffn(xw, vt, ws_ref):
        # --- depthwise Conv1d over D: K unrolled taps on the halo'd window ---
        y = vt[:, 0:1] * xw[:, 0:TD]
        for k in range(1, K):
            y = y + vt[:, k:k + 1] * xw[:, k:k + TD]
        # --- stage 1: BN(norm1,norm)+ffnpw1 folded into W1' ; exact GELU ---
        z = jnp.dot(ws_ref[0], y, preferred_element_type=jnp.float32) + vt[:, K:K + 1]
        z = _gelu_exact(z)
        # --- stage 2: ffnpw2 fused with ffn1pw1 (Wmid = V1 @ W2) ; GELU ---
        z = jnp.dot(ws_ref[1], z, preferred_element_type=jnp.float32) + vt[:, K + 1:K + 2]
        z = _gelu_exact(z)
        # --- stage 3: ffn1pw2 (already in M-major channel coordinates) ---
        z = jnp.dot(ws_ref[2], z, preferred_element_type=jnp.float32) + vt[:, K + 2:K + 3]
        return z

    if host_halo:
        def kernel(xt_ref, ws_ref, vt_ref, o_ref):
            xw = xt_ref[...]                              # (C, TD + K - 1)
            z = conv_and_ffn(xw, vt_ref[...], ws_ref)
            o_ref[...] = xw[:, P:P + TD] + z              # residual from window
    else:
        def kernel(xt_ref, ws_ref, vt_ref, o_ref, xw_ref):
            C = xt_ref.shape[0]
            x = xt_ref[...]                               # (C, TD) unpadded
            # Assemble the zero-padded conv window in VMEM scratch (no host
            # jnp.pad pass over HBM; edge writes are a couple of lanes).
            if P > 0:
                xw_ref[:, 0:P] = jnp.zeros((C, P), x.dtype)
                xw_ref[:, P + TD:] = jnp.zeros((C, P), x.dtype)
            xw_ref[:, P:P + TD] = x
            z = conv_and_ffn(xw_ref[...], vt_ref[...], ws_ref)
            o_ref[...] = x + z
    return kernel


# ----------------------------------------------------------------------------
# Host-side parameter packing (exact inference-time algebra).
# Channel order is M-major: c = m*N + n  (matches x.reshape(B, M*N, D)).
# ----------------------------------------------------------------------------
def _block_diag_m_major(Wm, M, N):
    # Wm: (M, N, N) -> dense (C, C), block-diagonal over m.
    C = M * N
    out = jnp.zeros((C, C), jnp.float32)
    for m in range(M):
        out = out.at[m * N:(m + 1) * N, m * N:(m + 1) * N].set(Wm[m])
    return out


def _block_diag_n_as_m_major(Vn, M, N):
    # Vn: (N, M, M), block-diagonal over n in N-major layout; return the same
    # operator expressed in M-major channel coordinates.
    C = M * N
    out = jnp.zeros((C, C), jnp.float32)
    for n in range(N):
        idx = jnp.arange(M) * N + n
        out = out.at[idx[:, None], idx[None, :]].set(Vn[n])
    return out


def pack_params(p, M, N):
    C = M * N
    K = p['w_dw'].shape[0]

    s = p['bn_scale'].reshape(C)
    t = p['bn_shift'].reshape(C)
    bdw = p['b_dw'].reshape(C)
    t0 = s * bdw + t                         # dw bias folded into BN shift

    W1d = _block_diag_m_major(p['W1'], M, N)
    W2d = _block_diag_m_major(p['W2'], M, N)
    V1d = _block_diag_n_as_m_major(p['V1'], M, N)
    V2d = _block_diag_n_as_m_major(p['V2'], M, N)

    b1v = p['b1'].reshape(C)
    b2v = p['b2'].reshape(C)
    c1v = p['c1'].T.reshape(C)               # (N,M) -> M-major vector
    c2v = p['c2'].T.reshape(C)

    # Fold BN affine into W1; fuse W2 with V1 (no nonlinearity in between).
    W1p = W1d * s[None, :]
    b1p = W1d @ t0 + b1v
    Wmid = V1d @ W2d
    bmid = V1d @ b2v + c1v
    W3p = V2d
    b3p = c2v

    wdw_ck = jnp.transpose(p['w_dw'], (1, 2, 0)).reshape(C, K)      # (C, K)
    wstack = jnp.stack([W1p, Wmid, W3p]).astype(jnp.float32)        # (3, C, C)
    vec = jnp.concatenate(
        [wdw_ck, b1p[:, None], bmid[:, None], b3p[:, None]],
        axis=1).astype(jnp.float32)                                 # (C, K+3)
    return wstack, vec


# ----------------------------------------------------------------------------
# Wrapper
# ----------------------------------------------------------------------------
def block_forward(x, p, *, max_td=512):
    B, M, N, D = x.shape
    C = M * N
    K = p['w_dw'].shape[0]
    P = K // 2

    wstack, vec = pack_params(p, M, N)
    x2 = x.reshape(B, C, D).astype(jnp.float32)

    # Large D: lane-dense 512-column tiles with host-built K-1 halos so the
    # depthwise conv never crosses tiles. Otherwise: full-D tile, in-kernel pad.
    host_halo = (D > max_td) and (D % max_td == 0)
    if host_halo:
        TD = max_td
        nT = D // TD
        TDp = TD + K - 1
        xp = jnp.pad(x2, ((0, 0), (0, 0), (P, P)))        # (B, C, D + K - 1)
        x_in = jnp.stack(
            [xp[:, :, j * TD: j * TD + TDp] for j in range(nT)], axis=1)
        x_spec = pl.BlockSpec((None, None, C, TDp), lambda b, j: (b, j, 0, 0))
        scratch = []
    else:
        TD = D
        nT = 1
        x_in = x2                                          # no host pad pass
        x_spec = pl.BlockSpec((None, C, D), lambda b, j: (b, 0, 0))
        scratch = [pltpu.VMEM((C, TD + K - 1), jnp.float32)]

    kernel = make_block_kernel(K, TD, host_halo)

    out = pl.pallas_call(
        kernel,
        out_shape=jax.ShapeDtypeStruct((B, C, D), jnp.float32),
        grid=(B, nT),
        in_specs=[
            x_spec,
            pl.BlockSpec((3, C, C), lambda b, j: (0, 0, 0)),
            pl.BlockSpec((C, K + 3), lambda b, j: (0, 0)),
        ],
        out_specs=pl.BlockSpec((None, C, TD), lambda b, j: (b, 0, j)),
        scratch_shapes=scratch,
        compiler_params=pltpu.CompilerParams(
            dimension_semantics=("parallel", "parallel")),
    )(x_in, wstack, vec)

    return out.reshape(B, M, N, D)


# ----------------------------------------------------------------------------
# Parameter init (same parameterization as the PyTorch module, eval mode)
# ----------------------------------------------------------------------------
def init_params(key, M, N, K):
    ks = jax.random.split(key, 20)
    f = lambda k, shape, s=0.1: (s * jax.random.normal(k, shape)).astype(jnp.float32)

    # dw: Conv1d(M*N, M*N, K, groups=M*N) -> weight (M*N,1,K) reshaped (K,M,N)
    w_dw = f(ks[0], (K, M, N), 0.3)
    b_dw = f(ks[1], (M, N), 0.1)

    # norm1 (M*N channels) + norm (N channels), eval-mode running stats, fused
    eps = 1e-5
    g1 = 1.0 + f(ks[2], (M, N));  be1 = f(ks[3], (M, N))
    mu1 = f(ks[4], (M, N))
    var1 = 1.0 + 0.1 * jnp.abs(jax.random.normal(ks[5], (M, N))).astype(jnp.float32)
    gn = 1.0 + f(ks[6], (N,));    ben = f(ks[7], (N,))
    mun = f(ks[8], (N,))
    varn = 1.0 + 0.1 * jnp.abs(jax.random.normal(ks[9], (N,))).astype(jnp.float32)
    s1 = g1 * jax.lax.rsqrt(var1 + eps); t1 = be1 - mu1 * s1
    sn = gn * jax.lax.rsqrt(varn + eps); tn = ben - mun * sn
    bn_scale = s1 * sn[None, :]
    bn_shift = t1 * sn[None, :] + tn[None, :]

    # ffnpw1/2: Conv1d(M*N, M*N, 1, groups=M) -> weight (M*N, N, 1) -> (M, N, N)
    W1 = f(ks[10], (M, N, N), 0.2); b1 = f(ks[11], (M, N))
    W2 = f(ks[12], (M, N, N), 0.2); b2 = f(ks[13], (M, N))
    # ffn1pw1/2: Conv1d(M*N, M*N, 1, groups=N) -> weight (N*M, M, 1) -> (N, M, M)
    V1 = f(ks[14], (N, M, M), 0.2); c1 = f(ks[15], (N, M))
    V2 = f(ks[16], (N, M, M), 0.2); c2 = f(ks[17], (N, M))

    return dict(w_dw=w_dw, b_dw=b_dw, bn_scale=bn_scale, bn_shift=bn_shift,
                W1=W1, b1=b1, W2=W2, b2=b2, V1=V1, c1=c1, V2=V2, c2=c2)


def block_reference(x, p):
    """Pure-JAX reference with the original (un-fused) semantics."""
    B, M, N, D = x.shape
    K = p['w_dw'].shape[0]; P = K // 2
    xp = jnp.pad(x, ((0, 0), (0, 0), (0, 0), (P, P)))
    y = p['b_dw'][None, :, :, None]
    for k in range(K):
        y = y + p['w_dw'][k][None, :, :, None] * xp[..., k:k + D]
    y = y * p['bn_scale'][None, :, :, None] + p['bn_shift'][None, :, :, None]
    y = jnp.einsum('mij,bmjd->bmid', p['W1'], y) + p['b1'][None, :, :, None]
    y = jax.nn.gelu(y, approximate=False)
    y = jnp.einsum('mij,bmjd->bmid', p['W2'], y) + p['b2'][None, :, :, None]
    yt = jnp.swapaxes(y, 1, 2)
    yt = jnp.einsum('nij,bnjd->bnid', p['V1'], yt) + p['c1'][None, :, :, None]
    yt = jax.nn.gelu(yt, approximate=False)
    yt = jnp.einsum('nij,bnjd->bnid', p['V2'], yt) + p['c2'][None, :, :, None]
    return x + jnp.swapaxes(yt, 1, 2)


if __name__ == "__main__":
    # Block(large_size=?, small_size=5, patchnum=8, dff=32, nvars=4)
    B, M, N, D, K = 2, 4, 8, 16, 5   # batch, nvars, patchnum, seq_len, small_size
    key = jax.random.PRNGKey(0)
    kx, kp = jax.random.split(key)
    x = jax.random.normal(kx, (B, M, N, D), dtype=jnp.float32)
    params = init_params(kp, M, N, K)

    fwd = jax.jit(block_forward)
    out = jax.block_until_ready(fwd(x, params))
    ref = block_reference(x, params)

    assert out.shape == (B, M, N, D)
    max_err = float(jnp.max(jnp.abs(out - ref)))
    assert max_err < 5e-3, f"kernel/reference mismatch: {max_err}"
    print("KERNEL_OK")
</pallas_src>

<mosaic_0001>
module attributes {stable_mosaic.version = 11 : i64} {
  func.func @kernel(%arg0: i32, %arg1: i32, %arg2: memref<1x32x16xf32, #tpu.memory_space<vmem>>, %arg3: memref<3x32x32xf32, #tpu.memory_space<vmem>>, %arg4: memref<32x8xf32, #tpu.memory_space<vmem>>, %arg5: memref<1x32x16xf32, #tpu.memory_space<vmem>>, %arg6: memref<32x20xf32, #tpu.memory_space<vmem>>) attributes {dimension_semantics = [#tpu.dimension_semantics<parallel>, #tpu.dimension_semantics<parallel>], iteration_bounds = array<i64: 2, 1>, scalar_prefetch = 0 : i64, scratch_operands = 1 : i64, tpu.core_type = #tpu.core_type<tc>, window_params = [{transform_indices = @transform_0, window_bounds = array<i64: 1, 32, 16>}, {pipeline_mode = #tpu.pipeline_mode<synchronous>, transform_indices = @transform_1, window_bounds = array<i64: 3, 32, 32>}, {pipeline_mode = #tpu.pipeline_mode<synchronous>, transform_indices = @transform_2, window_bounds = array<i64: 32, 8>}, {transform_indices = @transform_3, window_bounds = array<i64: 1, 32, 16>}]} {
    %c0 = arith.constant 0 : index
    %c0_0 = arith.constant 0 : index
    %c0_1 = arith.constant 0 : index
    %0 = vector.load %arg2[%c0, %c0_0, %c0_1] : memref<1x32x16xf32, #tpu.memory_space<vmem>>, vector<1x32x16xf32>
    %1 = vector.shape_cast %0 : vector<1x32x16xf32> to vector<32x16xf32>
    %cst = arith.constant 0.000000e+00 : f32
    %2 = vector.broadcast %cst : f32 to vector<32x2xf32>
    %c0_2 = arith.constant 0 : index
    %c0_3 = arith.constant 0 : index
    %3 = vector.load %arg6[%c0_2, %c0_3] : memref<32x20xf32, #tpu.memory_space<vmem>>, vector<32x2xf32>
    tpu.vector_store %arg6[%c0_2, %c0_3], %2 {strides = array<i32>} : memref<32x20xf32, #tpu.memory_space<vmem>>, vector<32x2xf32>,
    %cst_4 = arith.constant 0.000000e+00 : f32
    %4 = vector.broadcast %cst_4 : f32 to vector<32x2xf32>
    %c0_5 = arith.constant 0 : index
    %c18 = arith.constant 18 : index
    %5 = vector.load %arg6[%c0_5, %c18] : memref<32x20xf32, #tpu.memory_space<vmem>>, vector<32x2xf32>
    tpu.vector_store %arg6[%c0_5, %c18], %4 {strides = array<i32>} : memref<32x20xf32, #tpu.memory_space<vmem>>, vector<32x2xf32>,
    %c0_6 = arith.constant 0 : index
    %c2 = arith.constant 2 : index
    %6 = vector.load %arg6[%c0_6, %c2] : memref<32x20xf32, #tpu.memory_space<vmem>>, vector<32x16xf32>
    tpu.vector_store %arg6[%c0_6, %c2], %1 {strides = array<i32>} : memref<32x20xf32, #tpu.memory_space<vmem>>, vector<32x16xf32>,
    %c0_7 = arith.constant 0 : index
    %c0_8 = arith.constant 0 : index
    %7 = vector.load %arg6[%c0_7, %c0_8] : memref<32x20xf32, #tpu.memory_space<vmem>>, vector<32x20xf32>
    %c0_9 = arith.constant 0 : index
    %c0_10 = arith.constant 0 : index
    %8 = vector.load %arg4[%c0_9, %c0_10] : memref<32x8xf32, #tpu.memory_space<vmem>>, vector<32x8xf32>
    %9 = vector.extract_strided_slice %8 {offsets = [0, 0], sizes = [32, 1], strides = [1, 1]} : vector<32x8xf32> to vector<32x1xf32>
    %10 = vector.extract_strided_slice %7 {offsets = [0, 0], sizes = [32, 16], strides = [1, 1]} : vector<32x20xf32> to vector<32x16xf32>
    %11 = vector.broadcast %9 : vector<32x1xf32> to vector<32x16xf32>
    %12 = arith.mulf %11, %10 : vector<32x16xf32>
    %13 = vector.extract_strided_slice %8 {offsets = [0, 1], sizes = [32, 1], strides = [1, 1]} : vector<32x8xf32> to vector<32x1xf32>
    %14 = vector.extract_strided_slice %7 {offsets = [0, 1], sizes = [32, 16], strides = [1, 1]} : vector<32x20xf32> to vector<32x16xf32>
    %15 = vector.broadcast %13 : vector<32x1xf32> to vector<32x16xf32>
    %16 = arith.mulf %15, %14 : vector<32x16xf32>
    %17 = arith.addf %12, %16 : vector<32x16xf32>
    %18 = vector.extract_strided_slice %8 {offsets = [0, 2], sizes = [32, 1], strides = [1, 1]} : vector<32x8xf32> to vector<32x1xf32>
    %19 = vector.extract_strided_slice %7 {offsets = [0, 2], sizes = [32, 16], strides = [1, 1]} : vector<32x20xf32> to vector<32x16xf32>
    %20 = vector.broadcast %18 : vector<32x1xf32> to vector<32x16xf32>
    %21 = arith.mulf %20, %19 : vector<32x16xf32>
    %22 = arith.addf %17, %21 : vector<32x16xf32>
    %23 = vector.extract_strided_slice %8 {offsets = [0, 3], sizes = [32, 1], strides = [1, 1]} : vector<32x8xf32> to vector<32x1xf32>
    %24 = vector.extract_strided_slice %7 {offsets = [0, 3], sizes = [32, 16], strides = [1, 1]} : vector<32x20xf32> to vector<32x16xf32>
    %25 = vector.broadcast %23 : vector<32x1xf32> to vector<32x16xf32>
    %26 = arith.mulf %25, %24 : vector<32x16xf32>
    %27 = arith.addf %22, %26 : vector<32x16xf32>
    %28 = vector.extract_strided_slice %8 {offsets = [0, 4], sizes = [32, 1], strides = [1, 1]} : vector<32x8xf32> to vector<32x1xf32>
    %29 = vector.extract_strided_slice %7 {offsets = [0, 4], sizes = [32, 16], strides = [1, 1]} : vector<32x20xf32> to vector<32x16xf32>
    %30 = vector.broadcast %28 : vector<32x1xf32> to vector<32x16xf32>
    %31 = arith.mulf %30, %29 : vector<32x16xf32>
    %32 = arith.addf %27, %31 : vector<32x16xf32>
    %c0_11 = arith.constant 0 : index
    %c0_12 = arith.constant 0 : index
    %c0_13 = arith.constant 0 : index
    %33 = vector.load %arg3[%c0_11, %c0_12, %c0_13] : memref<3x32x32xf32, #tpu.memory_space<vmem>>, vector<1x32x32xf32>
    %34 = vector.shape_cast %33 : vector<1x32x32xf32> to vector<32x32xf32>
    %cst_14 = arith.constant dense<0.000000e+00> : vector<32x16xf32>
    %35 = tpu.matmul %34, %32, %cst_14 {dimension_numbers = #tpu.dot_dimension_numbers<[1], [0], [0], [1], [0, 0, 1, 1], [], []>} : vector<32x32xf32>, vector<32x16xf32>, vector<32x16xf32> -> vector<32x16xf32>
    %36 = vector.extract_strided_slice %8 {offsets = [0, 5], sizes = [32, 1], strides = [1, 1]} : vector<32x8xf32> to vector<32x1xf32>
    %37 = vector.broadcast %36 : vector<32x1xf32> to vector<32x16xf32>
    %38 = arith.addf %35, %37 : vector<32x16xf32>
    %cst_15 = arith.constant 5.000000e-01 : f32
    %39 = vector.broadcast %cst_15 : f32 to vector<32x16xf32>
    %40 = arith.mulf %39, %38 : vector<32x16xf32>
    %cst_16 = arith.constant 0.707106769 : f32
    %41 = vector.broadcast %cst_16 : f32 to vector<32x16xf32>
    %42 = arith.mulf %38, %41 : vector<32x16xf32>
    %43 = math.erf %42 : vector<32x16xf32>
    %cst_17 = arith.constant 1.000000e+00 : f32
    %44 = vector.broadcast %cst_17 : f32 to vector<32x16xf32>
    %45 = arith.addf %44, %43 : vector<32x16xf32>
    %46 = arith.mulf %40, %45 : vector<32x16xf32>
    %c1 = arith.constant 1 : index
    %c0_18 = arith.constant 0 : index
    %c0_19 = arith.constant 0 : index
    %47 = vector.load %arg3[%c1, %c0_18, %c0_19] : memref<3x32x32xf32, #tpu.memory_space<vmem>>, vector<1x32x32xf32>
    %48 = vector.shape_cast %47 : vector<1x32x32xf32> to vector<32x32xf32>
    %cst_20 = arith.constant dense<0.000000e+00> : vector<32x16xf32>
    %49 = tpu.matmul %48, %46, %cst_20 {dimension_numbers = #tpu.dot_dimension_numbers<[1], [0], [0], [1], [0, 0, 1, 1], [], []>} : vector<32x32xf32>, vector<32x16xf32>, vector<32x16xf32> -> vector<32x16xf32>
    %50 = vector.extract_strided_slice %8 {offsets = [0, 6], sizes = [32, 1], strides = [1, 1]} : vector<32x8xf32> to vector<32x1xf32>
    %51 = vector.broadcast %50 : vector<32x1xf32> to vector<32x16xf32>
    %52 = arith.addf %49, %51 : vector<32x16xf32>
    %cst_21 = arith.constant 5.000000e-01 : f32
    %53 = vector.broadcast %cst_21 : f32 to vector<32x16xf32>
    %54 = arith.mulf %53, %52 : vector<32x16xf32>
    %cst_22 = arith.constant 0.707106769 : f32
    %55 = vector.broadcast %cst_22 : f32 to vector<32x16xf32>
    %56 = arith.mulf %52, %55 : vector<32x16xf32>
    %57 = math.erf %56 : vector<32x16xf32>
    %cst_23 = arith.constant 1.000000e+00 : f32
    %58 = vector.broadcast %cst_23 : f32 to vector<32x16xf32>
    %59 = arith.addf %58, %57 : vector<32x16xf32>
    %60 = arith.mulf %54, %59 : vector<32x16xf32>
    %c2_24 = arith.constant 2 : index
    %c0_25 = arith.constant 0 : index
    %c0_26 = arith.constant 0 : index
    %61 = vector.load %arg3[%c2_24, %c0_25, %c0_26] : memref<3x32x32xf32, #tpu.memory_space<vmem>>, vector<1x32x32xf32>
    %62 = vector.shape_cast %61 : vector<1x32x32xf32> to vector<32x32xf32>
    %cst_27 = arith.constant dense<0.000000e+00> : vector<32x16xf32>
    %63 = tpu.matmul %62, %60, %cst_27 {dimension_numbers = #tpu.dot_dimension_numbers<[1], [0], [0], [1], [0, 0, 1, 1], [], []>} : vector<32x32xf32>, vector<32x16xf32>, vector<32x16xf32> -> vector<32x16xf32>
    %64 = vector.extract_strided_slice %8 {offsets = [0, 7], sizes = [32, 1], strides = [1, 1]} : vector<32x8xf32> to vector<32x1xf32>
    %65 = vector.broadcast %64 : vector<32x1xf32> to vector<32x16xf32>
    %66 = arith.addf %63, %65 : vector<32x16xf32>
    %67 = arith.addf %1, %66 : vector<32x16xf32>
    %c0_28 = arith.constant 0 : index
    %c0_29 = arith.constant 0 : index
    %c0_30 = arith.constant 0 : index
    %68 = vector.load %arg5[%c0_28, %c0_29, %c0_30] : memref<1x32x16xf32, #tpu.memory_space<vmem>>, vector<1x32x16xf32>
    %69 = vector.shape_cast %68 : vector<1x32x16xf32> to vector<32x16xf32>
    %70 = vector.shape_cast %67 : vector<32x16xf32> to vector<1x32x16xf32>
    tpu.vector_store %arg5[%c0_28, %c0_29, %c0_30], %70 {strides = array<i32>} : memref<1x32x16xf32, #tpu.memory_space<vmem>>, vector<1x32x16xf32>,
    return
  }
  func.func @transform_0(%arg0: i32, %arg1: i32) -> (i32, i32, i32) {
    %c0_i32 = arith.constant 0 : i32
    %c0_i32_0 = arith.constant 0 : i32
    %c0_i32_1 = arith.constant 0 : i32
    return %arg0, %c0_i32, %c0_i32_0 : i32, i32, i32
  }
  func.func @transform_1(%arg0: i32, %arg1: i32) -> (i32, i32, i32) {
    %c0_i32 = arith.constant 0 : i32
    %c0_i32_0 = arith.constant 0 : i32
    %c0_i32_1 = arith.constant 0 : i32
    %c0_i32_2 = arith.constant 0 : i32
    return %c0_i32, %c0_i32_0, %c0_i32_1 : i32, i32, i32
  }
  func.func @transform_2(%arg0: i32, %arg1: i32) -> (i32, i32) {
    %c0_i32 = arith.constant 0 : i32
    %c0_i32_0 = arith.constant 0 : i32
    %c0_i32_1 = arith.constant 0 : i32
    return %c0_i32, %c0_i32_0 : i32, i32
  }
  func.func @transform_3(%arg0: i32, %arg1: i32) -> (i32, i32, i32) {
    %c0_i32 = arith.constant 0 : i32
    %c0_i32_0 = arith.constant 0 : i32
    return %arg0, %c0_i32, %arg1 : i32, i32, i32
  }
}

</mosaic_0001>

<llo_original>
// kernel: mul.39
$region0: #{mul.39}
  %s0 = inlined_call_operand.vmem [shape: f32[4,8], index: 0, kind: input, shape index: {}]
  %s1 = inlined_call_operand.vmem [shape: f32[32], index: 1, kind: output, shape index: {}]
  $region1: #{mul.39} parent=0
    #allocation0 [shape = 'u8[4096]{0}', space=vmem, size = 0x1000, scoped, tag = 'scoped mem for output reshape']
    #allocation1 [shape = 'u8[4096]{0}', space=vmem, size = 0x1000, scoped, tag = 'scoped mem for input reshape']
    %s3 = sshllo.u32 0, 4
    %v4 = vld [vmem:[%s0] sm:%s3]
    %5 = vst [vmem:[#allocation1] sm:%s3] %v4
    %v6 = vld [vmem:[#allocation1] sm:$0x1]
    %vm7 = vcmask 64512
    %8 = vst.msk [vmem:[#allocation0] sm:$0x1] %vm7, %v6
    %s9 = scalar_lea.vmem [#allocation1], 3
    %v10 = vld [vmem:[%s9] sm:$0x1]
    %11 = vrot.lane.b32.xlu0 %v10, 24
    %v12 = vpop.permute.xlu0 %11
    %vm13 = vcmask 261312
    %14 = vst.msk [vmem:[#allocation0] sm:$0x1] %vm13, %v12
    %s15 = scalar_lea.vmem [#allocation1], 2
    %v16 = vld [vmem:[%s15] sm:$0x1]
    %17 = vrot.lane.b32.xlu0 %v16, 16
    %v18 = vpop.permute.xlu0 %17
    %vm19 = vcmask 195712
    %20 = vst.msk [vmem:[#allocation0] sm:$0x1] %vm19, %v18
    %s21 = scalar_lea.vmem [#allocation1], 1
    %v22 = vld [vmem:[%s21] sm:$0x1]
    %23 = vrot.lane.b32.xlu0 %v22, 8
    %v24 = vpop.permute.xlu0 %23
    %vm25 = vcmask 130112
    %26 = vst.msk [vmem:[#allocation0] sm:$0x1] %vm25, %v24
    %s28 = sshllo.u32 0, 1
    %v30 = vld [vmem:[#allocation0] sm:%s28]
    %s31 = sshllo.u32 0, 1
    %32 = vst [vmem:[%s1] sm:%s31] %v30

// kernel: block_forward.1
$region0: #{block_forward.1}
  #allocation0 [shape = 'u32[]', space=smem, size = 0x4, offset = 0x4, fixed_abs, tag = 'smem constant byte address 0x4 - core index']
  #allocation1 [shape = 'u32[144,128]{1,0:T(1,128)}', space=vmem, size = 0x12000, scoped, tag = 'internal scratch']
  #allocation2 [shape = 'f32[32,20]{1,0:T(8,128)}', space=vmem, size = 0x4000, scoped, tag = 'scratch operand']
  %s0 = inlined_call_operand.vmem [shape: f32[2,32,16], index: 0, kind: input, shape index: {}]
  %s1 = inlined_call_operand.vmem [shape: f32[3,32,32], index: 1, kind: input, shape index: {}]
  %s2 = inlined_call_operand.vmem [shape: f32[32,8], index: 2, kind: input, shape index: {}]
  %s3 = inlined_call_operand.hbm [shape: f32[2,32,16], index: 3, kind: output, shape index: {}]
  %s4 = sld [smem:[#allocation0]]
  $region45: #{block_forward.1} parent=0
    _
  %s6 = ssub.s32 1, %s4
  %s7 = scalar_select 0, %s6, %s4
  $region1: #{block_forward.1} parent=0
    #allocation3 [shape = 'u8[32768]{0}', space=vmem, size = 0x8000, scoped, tag = 'output window, operand 0']
    #allocation4 [shape = 's32[2]{0}', space=sflag, size = 0x8, scoped, tag = 'scoped memory for block_forward.1']
    %8 = vsyncpa [#allocation4], 0
    %s9 = scalar_lea.sflag [#allocation4], 1
    %10 = vsyncpa %s9, 0
    loop: start=0, step=1, limit=4
    $region2: #{block_forward.1} parent=1 // loop_pre_header
      _
    $region3: #{block_forward.1} parent=1 // loop_header
      %s12 = sphi 0, %s16
      %p13 = scmp.ge.s32.totalorder %s12, 4
      %s19 = sphi 0, %s31
      %s20 = sphi 0, %s27
      %s21 = sphi 0, %s19
      %s22 = sphi 0, %s20
      %s23 = sphi 0, %s21
      %s24 = sphi 0, %s22
      %s34 = sphi 0, %s36
      %s37 = sphi 0, %s34
      %s38 = sphi 0, %s37
      %s54 = sphi 0, %s38
      %s58 = sphi 0, %s58
      %s60 = sphi 0, %s58
      %s61 = sphi 0, %s60
      %s75 = sphi 0, %s61
      %s79 = sphi 0, %s79
      %s81 = sphi 0, %s79
      %s82 = sphi 0, %s81
      %s96 = sphi 0, %s82
      %s104 = sphi 0, %s106
      %s107 = sphi 0, %s104
      %s108 = sphi 0, %s107
      %s124 = sphi 0, %s108
    $region4: #{block_forward.1} parent=1 // loop_header_branch
      %15 = sbr.rel (%p13) target = $region8
    $region5: #{block_forward.1} parent=1 // loop_body
      %s17 = ssub.s32 %s12, 1
      %s18 = ssub.s32 %s12, 2
      %s25 = sadd.s32 1, %s20
      %p26 = scmp.ge.s32.totalorder %s25, 1
      %s27 = scalar_select %p26, 0, %s25
      %s28 = sadd.s32 1, %s19
      %s29 = scalar_select %p26, %s28, %s19
      %p30 = scmp.ge.s32.totalorder %s29, 2
      %s31 = scalar_select %p30, 0, %s29
      %s32 = ssub.s32 %s19, %s31
      %p33 = scmp.eq.s32.totalorder %s32, 0
      %s35 = sadd.s32 %s34, 1
      %s36 = scalar_select %p33, %s34, %s35
      %p39 = pneg %p33
      %p40 = scmp.eq.s32.totalorder %s12, 1
      %p41 = por %p39, %p40
      %p42 = scmp.ne.s32.totalorder %s34, %s37
      %p43 = scmp.eq.s32.totalorder %s12, 0
      %p44 = por %p42, %p43
      %p45 = scmp.ne.s32.totalorder %s34, %s37
      %p46 = scmp.eq.s32.totalorder %s17, 1
      %p47 = por %p45, %p46
      %p48 = scmp.ne.s32.totalorder %s37, %s38
      %p49 = scmp.eq.s32.totalorder %s17, 0
      %p50 = por %p48, %p49
      %p51 = scmp.ne.s32.totalorder %s37, %s38
      %p52 = scmp.eq.s32.totalorder %s18, 1
      %p53 = por %p51, %p52
      %p55 = scmp.ne.s32.totalorder %s38, %s54
      %p56 = scmp.eq.s32.totalorder %s18, 0
      %p57 = por %p55, %p56
      %s59 = sadd.s32 %s58, 1
      %p62 = scmp.eq.s32.totalorder %s12, 1
      %p63 = scmp.ne.s32.totalorder %s58, %s60
      %p64 = scmp.eq.s32.totalorder %s12, 0
      %p65 = por %p63, %p64
      %p66 = scmp.ne.s32.totalorder %s58, %s60
      %p67 = scmp.eq.s32.totalorder %s17, 1
      %p68 = por %p66, %p67
      %p69 = scmp.ne.s32.totalorder %s60, %s61
      %p70 = scmp.eq.s32.totalorder %s17, 0
      %p71 = por %p69, %p70
      %p72 = scmp.ne.s32.totalorder %s60, %s61
      %p73 = scmp.eq.s32.totalorder %s18, 1
      %p74 = por %p72, %p73
      %p76 = scmp.ne.s32.totalorder %s61, %s75
      %p77 = scmp.eq.s32.totalorder %s18, 0
      %p78 = por %p76, %p77
      %s80 = sadd.s32 %s79, 1
      %p83 = scmp.eq.s32.totalorder %s12, 1
      %p84 = scmp.ne.s32.totalorder %s79, %s81
      %p85 = scmp.eq.s32.totalorder %s12, 0
      %p86 = por %p84, %p85
      %p87 = scmp.ne.s32.totalorder %s79, %s81
      %p88 = scmp.eq.s32.totalorder %s17, 1
      %p89 = por %p87, %p88
      %p90 = scmp.ne.s32.totalorder %s81, %s82
      %p91 = scmp.eq.s32.totalorder %s17, 0
      %p92 = por %p90, %p91
      %p93 = scmp.ne.s32.totalorder %s81, %s82
      %p94 = scmp.eq.s32.totalorder %s18, 1
      %p95 = por %p93, %p94
      %p97 = scmp.ne.s32.totalorder %s82, %s96
      %p98 = scmp.eq.s32.totalorder %s18, 0
      %p99 = por %p97, %p98
      %s100 = ssub.s32 %s19, %s31
      %s101 = ssub.s32 %s20, %s27
      %s102 = sor.u32 %s100, %s101
      %p103 = scmp.eq.s32.totalorder %s102, 0
      %s105 = sadd.s32 %s104, 1
      %s106 = scalar_select %p103, %s104, %s105
      %p109 = pneg %p103
      %p110 = scmp.eq.s32.totalorder %s12, 1
      %p111 = por %p109, %p110
      %p112 = scmp.ne.s32.totalorder %s104, %s107
      %p113 = scmp.eq.s32.totalorder %s12, 0
      %p114 = por %p112, %p113
      %p115 = scmp.ne.s32.totalorder %s104, %s107
      %p116 = scmp.eq.s32.totalorder %s17, 1
      %p117 = por %p115, %p116
      %p118 = scmp.ne.s32.totalorder %s107, %s108
      %p119 = scmp.eq.s32.totalorder %s17, 0
      %p120 = por %p118, %p119
      %p121 = scmp.ne.s32.totalorder %s107, %s108
      %p122 = scmp.eq.s32.totalorder %s18, 1
      %p123 = por %p121, %p122
      %p125 = scmp.ne.s32.totalorder %s108, %s124
      %p126 = scmp.eq.s32.totalorder %s18, 0
      %p127 = por %p125, %p126
      %p128 = scmp.le.s32.totalorder 1, %s12
      %p129 = scmp.lt.s32.totalorder %s12, 3
      %p130 = pnand %p128, %p129
      %p131 = pneg %p130
      // Predicated region
      $region9: #{block_forward.1} parent=5 // pred_check
        _
      $region10: #{block_forward.1} parent=5 // pred_check_branch
        %133 = sbr.rel (%p130) target = $region12
      $region11: #{block_forward.1} parent=5 // pred_region
        %s134 = ssub.s32 %s12, 1
        // Predicated region
        $region13: #{block_forward.1} parent=11 // pred_check
          %p135 = pneg %p71
        $region14: #{block_forward.1} parent=11 // pred_check_branch
          %137 = sbr.rel (%p135) target = $region16
        $region15: #{block_forward.1} parent=11 // pred_region
          _
        $region16: #{block_forward.1} parent=11 // pred_fallthru
          _
        // Predicated region
        $region17: #{block_forward.1} parent=11 // pred_check
          %p138 = pneg %p92
        $region18: #{block_forward.1} parent=11 // pred_check_branch
          %140 = sbr.rel (%p138) target = $region20
        $region19: #{block_forward.1} parent=11 // pred_region
          _
        $region20: #{block_forward.1} parent=11 // pred_fallthru
          _
      $region12: #{block_forward.1} parent=5 // pred_fallthru
        _
      %p141 = scmp.lt.s32.totalorder %s12, 2
      // Predicated region
      $region21: #{block_forward.1} parent=5 // pred_check
        %p142 = pneg %p141
      $region22: #{block_forward.1} parent=5 // pred_check_branch
        %144 = sbr.rel (%p142) target = $region24
      $region23: #{block_forward.1} parent=5 // pred_region
        // Predicated region
        $region25: #{block_forward.1} parent=23 // pred_check
          %p145 = pneg %p44
        $region26: #{block_forward.1} parent=23 // pred_check_branch
          %147 = sbr.rel (%p145) target = $region28
        $region27: #{block_forward.1} parent=23 // pred_region
          %p148 = scmp.lt.s32.totalorder %s19, 1
          %s149 = scalar_select %p148, %s19, 1
          %s150 = smul.addr %s149, 4
          %s151 = smul.addr %s150, 8
          %s152 = scalar_lea.vmem %s0, %s151
        $region28: #{block_forward.1} parent=23 // pred_fallthru
          _
      $region24: #{block_forward.1} parent=5 // pred_fallthru
        _
      %p153 = scmp.le.s32.totalorder 1, %s12
      %p154 = scmp.lt.s32.totalorder %s12, 3
      %p155 = pnand %p153, %p154
      %p156 = pneg %p155
      // Predicated region
      $region29: #{block_forward.1} parent=5 // pred_check
        _
      $region30: #{block_forward.1} parent=5 // pred_check_branch
        %158 = sbr.rel (%p155) target = $region32
      $region31: #{block_forward.1} parent=5 // pred_region
        %s159 = ssub.s32 %s12, 1
        %p160 = scmp.lt.s32.totalorder %s21, 1
        %s161 = scalar_select %p160, %s21, 1
        %s162 = smul.addr %s161, 4
        %s163 = smul.addr %s162, 8
        %s164 = scalar_lea.vmem %s0, %s163
        %p165 = pneg %p50
        %p166 = pneg %p47
        %p167 = pneg %p71
        %p168 = pneg %p68
        %p169 = pneg %p92
        %p170 = pneg %p89
        %p171 = pneg %p120
        %p172 = pneg %p117
        %s173 = sand.u32 %s107, 1
        %s174 = scalar_lea.sflag [#allocation4], %s173
        %s175 = sand.u32 %s107, 1
        %s176 = smul.addr %s175, 32
        %s177 = scalar_lea.vmem [#allocation3], %s176
        %p178 = scmp.lt.s32.totalorder %s21, 1
        %s179 = scalar_select %p178, %s21, 1
        %s180 = smul.addr %s179, 4
        %s181 = smul.addr %s180, 8
        %s182 = scalar_lea.vmem %s0, %s181
        %v183 = vld [vmem:[%s182] sm:$0xff]
        %v184 = vld [vmem:[%s182 + $0x8] sm:$0xff]
        %v185 = vld [vmem:[%s182 + $0x10] sm:$0xff]
        %v186 = vld [vmem:[%s182 + $0x18] sm:$0xff]
        %vm187 = vcmask 15360
        %188 = vst.msk [vmem:[#allocation2] sm:$0xff] %vm187, 0.0
        %189 = vst.msk [vmem:[#allocation2 + $0x8] sm:$0xff] %vm187, 0.0
        %190 = vst.msk [vmem:[#allocation2 + $0x10] sm:$0xff] %vm187, 0.0
        %191 = vst.msk [vmem:[#allocation2 + $0x18] sm:$0xff] %vm187, 0.0
        %vm192 = vcmask 162960
        %193 = vst.msk [vmem:[#allocation2] sm:$0xff] %vm192, 0.0
        %194 = vst.msk [vmem:[#allocation2 + $0x8] sm:$0xff] %vm192, 0.0
        %195 = vst.msk [vmem:[#allocation2 + $0x10] sm:$0xff] %vm192, 0.0
        %196 = vst.msk [vmem:[#allocation2 + $0x18] sm:$0xff] %vm192, 0.0
        %201 = vrot.lane.b32.xlu0 %v183, 2
        %v202 = vpop.permute.xlu0 %201
        %203 = vrot.lane.b32.xlu0 %v184, 2
        %v204 = vpop.permute.xlu0 %203
        %205 = vrot.lane.b32.xlu0 %v185, 2
        %v206 = vpop.permute.xlu0 %205
        %207 = vrot.lane.b32.xlu0 %v186, 2
        %v208 = vpop.permute.xlu0 %207
        %vm213 = vcmask 146448
        %214 = vst.msk [vmem:[#allocation2] sm:$0xff] %vm213, %v202
        %215 = vst.msk [vmem:[#allocation2 + $0x8] sm:$0xff] %vm213, %v204
        %216 = vst.msk [vmem:[#allocation2 + $0x10] sm:$0xff] %vm213, %v206
        %217 = vst.msk [vmem:[#allocation2 + $0x18] sm:$0xff] %vm213, %v208
        %v218 = vld [vmem:[#allocation2] sm:$0xff]
        %v219 = vld [vmem:[#allocation2 + $0x8] sm:$0xff]
        %v220 = vld [vmem:[#allocation2 + $0x10] sm:$0xff]
        %v221 = vld [vmem:[#allocation2 + $0x18] sm:$0xff]
        %v222 = vld [vmem:[%s2] sm:$0xff]
        %v223 = vld [vmem:[%s2 + $0x8] sm:$0xff]
        %v224 = vld [vmem:[%s2 + $0x10] sm:$0xff]
        %v225 = vld [vmem:[%s2 + $0x18] sm:$0xff]
        %227 = vset.pattern.permute.xlu0 0
        %228 = vperm.xlu0 %227, %v222
        %v229 = vpop.permute.xlu0 %228
        %232 = vset.pattern.permute.xlu0 0
        %233 = vperm.xlu0 %232, %v223
        %v234 = vpop.permute.xlu0 %233
        %237 = vset.pattern.permute.xlu0 0
        %238 = vperm.xlu0 %237, %v224
        %v239 = vpop.permute.xlu0 %238
        %242 = vset.pattern.permute.xlu0 0
        %243 = vperm.xlu0 %242, %v225
        %v244 = vpop.permute.xlu0 %243
        %v246 = vmul.f32 %v229, %v218
        %v247 = vmul.f32 %v234, %v219
        %v248 = vmul.f32 %v239, %v220
        %v249 = vmul.f32 %v244, %v221
        %250 = vset.pattern.permute.xlu0 1
        %251 = vperm.xlu0 %250, %v222
        %v252 = vpop.permute.xlu0 %251
        %254 = vset.pattern.permute.xlu0 1
        %255 = vperm.xlu0 %254, %v223
        %v256 = vpop.permute.xlu0 %255
        %258 = vset.pattern.permute.xlu0 1
        %259 = vperm.xlu0 %258, %v224
        %v260 = vpop.permute.xlu0 %259
        %262 = vset.pattern.permute.xlu0 1
        %263 = vperm.xlu0 %262, %v225
        %v264 = vpop.permute.xlu0 %263
        %v266 = vmul.f32 %v252, %v218
        %v267 = vmul.f32 %v256, %v219
        %v268 = vmul.f32 %v260, %v220
        %v269 = vmul.f32 %v264, %v221
        %274 = vrot.lane.b32.xlu0 %v266, 127
        %v275 = vpop.permute.xlu0 %274
        %276 = vrot.lane.b32.xlu0 %v267, 127
        %v277 = vpop.permute.xlu0 %276
        %278 = vrot.lane.b32.xlu0 %v268, 127
        %v279 = vpop.permute.xlu0 %278
        %280 = vrot.lane.b32.xlu0 %v269, 127
        %v281 = vpop.permute.xlu0 %280
        %v286 = vadd.f32 %v246, %v275
        %v287 = vadd.f32 %v247, %v277
        %v288 = vadd.f32 %v248, %v279
        %v289 = vadd.f32 %v249, %v281
        %290 = vset.pattern.permute.xlu0 2
        %291 = vperm.xlu0 %290, %v222
        %v292 = vpop.permute.xlu0 %291
        %294 = vset.pattern.permute.xlu0 2
        %295 = vperm.xlu0 %294, %v223
        %v296 = vpop.permute.xlu0 %295
        %298 = vset.pattern.permute.xlu0 2
        %299 = vperm.xlu0 %298, %v224
        %v300 = vpop.permute.xlu0 %299
        %302 = vset.pattern.permute.xlu0 2
        %303 = vperm.xlu0 %302, %v225
        %v304 = vpop.permute.xlu0 %303
        %v306 = vmul.f32 %v292, %v218
        %v307 = vmul.f32 %v296, %v219
        %v308 = vmul.f32 %v300, %v220
        %v309 = vmul.f32 %v304, %v221
        %314 = vrot.lane.b32.xlu0 %v306, 126
        %v315 = vpop.permute.xlu0 %314
        %316 = vrot.lane.b32.xlu0 %v307, 126
        %v317 = vpop.permute.xlu0 %316
        %318 = vrot.lane.b32.xlu0 %v308, 126
        %v319 = vpop.permute.xlu0 %318
        %320 = vrot.lane.b32.xlu0 %v309, 126
        %v321 = vpop.permute.xlu0 %320
        %v326 = vadd.f32 %v286, %v315
        %v327 = vadd.f32 %v287, %v317
        %v328 = vadd.f32 %v288, %v319
        %v329 = vadd.f32 %v289, %v321
        %330 = vset.pattern.permute.xlu0 3
        %331 = vperm.xlu0 %330, %v222
        %v332 = vpop.permute.xlu0 %331
        %334 = vset.pattern.permute.xlu0 3
        %335 = vperm.xlu0 %334, %v223
        %v336 = vpop.permute.xlu0 %335
        %338 = vset.pattern.permute.xlu0 3
        %339 = vperm.xlu0 %338, %v224
        %v340 = vpop.permute.xlu0 %339
        %342 = vset.pattern.permute.xlu0 3
        %343 = vperm.xlu0 %342, %v225
        %v344 = vpop.permute.xlu0 %343
        %v346 = vmul.f32 %v332, %v218
        %v347 = vmul.f32 %v336, %v219
        %v348 = vmul.f32 %v340, %v220
        %v349 = vmul.f32 %v344, %v221
        %354 = vrot.lane.b32.xlu0 %v346, 125
        %v355 = vpop.permute.xlu0 %354
        %356 = vrot.lane.b32.xlu0 %v347, 125
        %v357 = vpop.permute.xlu0 %356
        %358 = vrot.lane.b32.xlu0 %v348, 125
        %v359 = vpop.permute.xlu0 %358
        %360 = vrot.lane.b32.xlu0 %v349, 125
        %v361 = vpop.permute.xlu0 %360
        %v366 = vadd.f32 %v326, %v355
        %v367 = vadd.f32 %v327, %v357
        %v368 = vadd.f32 %v328, %v359
        %v369 = vadd.f32 %v329, %v361
        %370 = vset.pattern.permute.xlu0 4
        %371 = vperm.xlu0 %370, %v222
        %v372 = vpop.permute.xlu0 %371
        %374 = vset.pattern.permute.xlu0 4
        %375 = vperm.xlu0 %374, %v223
        %v376 = vpop.permute.xlu0 %375
        %378 = vset.pattern.permute.xlu0 4
        %379 = vperm.xlu0 %378, %v224
        %v380 = vpop.permute.xlu0 %379
        %382 = vset.pattern.permute.xlu0 4
        %383 = vperm.xlu0 %382, %v225
        %v384 = vpop.permute.xlu0 %383
        %v386 = vmul.f32 %v372, %v218
        %v387 = vmul.f32 %v376, %v219
        %v388 = vmul.f32 %v380, %v220
        %v389 = vmul.f32 %v384, %v221
        %394 = vrot.lane.b32.xlu0 %v386, 124
        %v395 = vpop.permute.xlu0 %394
        %396 = vrot.lane.b32.xlu0 %v387, 124
        %v397 = vpop.permute.xlu0 %396
        %398 = vrot.lane.b32.xlu0 %v388, 124
        %v399 = vpop.permute.xlu0 %398
        %400 = vrot.lane.b32.xlu0 %v389, 124
        %v401 = vpop.permute.xlu0 %400
        %v406 = vadd.f32 %v366, %v395
        %v407 = vadd.f32 %v367, %v397
        %v408 = vadd.f32 %v368, %v399
        %v409 = vadd.f32 %v369, %v401
        %v410 = vld [vmem:[%s1] sm:$0xff]
        %v411 = vld [vmem:[%s1 + $0x8] sm:$0xff]
        %v412 = vld [vmem:[%s1 + $0x10] sm:$0xff]
        %v413 = vld [vmem:[%s1 + $0x18] sm:$0xff]
        %414 = vset.pattern.permute.xlu0 5
        %415 = vperm.xlu0 %414, %v222
        %v416 = vpop.permute.xlu0 %415
        %418 = vset.pattern.permute.xlu0 5
        %419 = vperm.xlu0 %418, %v223
        %v420 = vpop.permute.xlu0 %419
        %422 = vset.pattern.permute.xlu0 5
        %423 = vperm.xlu0 %422, %v224
        %v424 = vpop.permute.xlu0 %423
        %426 = vset.pattern.permute.xlu0 5
        %427 = vperm.xlu0 %426, %v225
        %v428 = vpop.permute.xlu0 %427
        %vm430 = vcmask 261120
        %v432 = vsel %vm430, %v410, 0
        %v435 = vsel %vm430, %v411, 0
        %v438 = vsel %vm430, %v412, 0
        %v441 = vsel %vm430, %v413, 0
        %443 = vmatprep.subr.mxu0 0.0
        %444 = vmatpush1.msra.mxu0 %v406
        %445 = vmatprep.subr.mxu0 0.0
        %446 = vmatpush1.msra.mxu0 %v407
        %447 = vmatprep.subr.mxu0 0.0
        %448 = vmatpush1.msra.mxu0 %v408
        %449 = vmatprep.subr.mxu0 0.0
        %450 = vmatpush1.msra.mxu0 %v409
        %451 = vmatprep.subr.mxu0 0.0
        %452 = vmatpush1.msra.mxu0 0.0
        %453 = vmatprep.subr.mxu0 0.0
        %454 = vmatpush1.msra.mxu0 0.0
        %455 = vmatprep.subr.mxu0 0.0
        %456 = vmatpush1.msra.mxu0 0.0
        %457 = vmatprep.subr.mxu0 0.0
        %458 = vmatpush1.msra.mxu0 0.0
        %459 = vmatprep.subr.mxu0 0.0
        %460 = vmatpush1.msra.mxu0 0.0
        %461 = vmatprep.subr.mxu0 0.0
        %462 = vmatpush1.msra.mxu0 0.0
        %463 = vmatprep.subr.mxu0 0.0
        %464 = vmatpush1.msra.mxu0 0.0
        %465 = vmatprep.subr.mxu0 0.0
        %466 = vmatpush1.msra.mxu0 0.0
        %467 = vmatprep.subr.mxu0 0.0
        %468 = vmatpush1.msra.mxu0 0.0
        %469 = vmatprep.subr.mxu0 0.0
        %470 = vmatpush1.msra.mxu0 0.0
        %471 = vmatprep.subr.mxu0 0.0
        %472 = vmatpush1.msra.mxu0 0.0
        %473 = vmatprep.subr.mxu0 0.0
        %474 = vmatpush1.msra.mxu0 0.0
        %475 = vmatprep.subr.mxu0 0.0
        %476 = vmatpush1.msra.mxu0 0.0
        %477 = vmatprep.subr.mxu0 0.0
        %478 = vmatpush1.msra.mxu0 0.0
        %479 = vmatprep.subr.mxu0 0.0
        %480 = vmatpush1.msra.mxu0 0.0
        %481 = vmatprep.subr.mxu0 0.0
        %482 = vmatpush1.msra.mxu0 0.0
        %483 = vmatprep.subr.mxu0 0.0
        %484 = vmatpush1.msra.mxu0 0.0
        %485 = vmatprep.subr.mxu0 0.0
        %486 = vmatpush1.msra.mxu0 0.0
        %487 = vmatprep.subr.mxu0 0.0
        %488 = vmatpush1.msra.mxu0 0.0
        %489 = vmatprep.subr.mxu0 0.0
        %490 = vmatpush1.msra.mxu0 0.0
        %491 = vmatprep.subr.mxu0 0.0
        %492 = vmatpush1.msra.mxu0 0.0
        %493 = vmatprep.subr.mxu0 0.0
        %494 = vmatpush1.msra.mxu0 0.0
        %495 = vmatprep.subr.mxu0 0.0
        %496 = vmatpush1.msra.mxu0 0.0
        %497 = vmatprep.subr.mxu0 0.0
        %498 = vmatpush1.msra.mxu0 0.0
        %499 = vmatprep.subr.mxu0 0.0
        %500 = vmatpush1.msra.mxu0 0.0
        %501 = vmatprep.subr.mxu0 0.0
        %502 = vmatpush1.msra.mxu0 0.0
        %503 = vmatprep.subr.mxu0 0.0
        %504 = vmatpush1.msra.mxu0 0.0
        %505 = vmatprep.subr.mxu0 0.0
        %506 = vmatpush1.msra.mxu0 0.0
        %507 = vmatprep.mubr.f32.mxu0 0.0
        %508 = vmatmul.mubr.f32.gmra.mrb[0].mxu0 %v432
        %v509 = vpop.f32.mrb[0].mxu0
        %v510 = vadd.f32 %v416, %v509
        %v511 = vpop.f32.mrb[0].mxu0
        %512 = vmatprep.mubr.f32.mxu0 0.0
        %513 = vmatmul.mubr.f32.gmra.mrb[0].mxu0 %v435
        %v514 = vpop.f32.mrb[0].mxu0
        %v515 = vadd.f32 %v420, %v514
        %v516 = vpop.f32.mrb[0].mxu0
        %517 = vmatprep.mubr.f32.mxu0 0.0
        %518 = vmatmul.mubr.f32.gmra.mrb[0].mxu0 %v438
        %v519 = vpop.f32.mrb[0].mxu0
        %v520 = vadd.f32 %v424, %v519
        %v521 = vpop.f32.mrb[0].mxu0
        %522 = vmatprep.mubr.f32.mxu0 0.0
        %523 = vmatmul.mubr.f32.gmra.mrb[0].mxu0 %v441
        %v524 = vpop.f32.mrb[0].mxu0
        %v525 = vadd.f32 %v428, %v524
        %v526 = vpop.f32.mrb[0].mxu0
        %527 = vdwg.mxu0
        %v528 = vmul.f32 %v510, 0.5
        %v529 = vmul.f32 %v515, 0.5
        %v530 = vmul.f32 %v520, 0.5
        %v531 = vmul.f32 %v525, 0.5
        %v532 = vmul.f32 %v510, 0.70710677
        %v533 = vmul.f32 %v515, 0.70710677
        %v534 = vmul.f32 %v520, 0.70710677
        %v535 = vmul.f32 %v525, 0.70710677
        %v536 = verf.f32.pop %v532
        %v537 = verf.f32.pop %v533
        %v538 = verf.f32.pop %v534
        %v539 = verf.f32.pop %v535
        %v540 = vadd.f32 %v536, 1.0
        %v541 = vadd.f32 %v537, 1.0
        %v542 = vadd.f32 %v538, 1.0
        %v543 = vadd.f32 %v539, 1.0
        %v544 = vmul.f32 %v528, %v540
        %v545 = vmul.f32 %v529, %v541
        %v546 = vmul.f32 %v530, %v542
        %v547 = vmul.f32 %v531, %v543
        %s548 = scalar_lea.vmem %s1, 32
        %v549 = vld [vmem:[%s548] sm:$0xff]
        %v550 = vld [vmem:[%s548 + $0x8] sm:$0xff]
        %v551 = vld [vmem:[%s548 + $0x10] sm:$0xff]
        %v552 = vld [vmem:[%s548 + $0x18] sm:$0xff]
        %553 = vset.pattern.permute.xlu0 6
        %554 = vperm.xlu0 %553, %v222
        %v555 = vpop.permute.xlu0 %554
        %557 = vset.pattern.permute.xlu0 6
        %558 = vperm.xlu0 %557, %v223
        %v559 = vpop.permute.xlu0 %558
        %561 = vset.pattern.permute.xlu0 6
        %562 = vperm.xlu0 %561, %v224
        %v563 = vpop.permute.xlu0 %562
        %565 = vset.pattern.permute.xlu0 6
        %566 = vperm.xlu0 %565, %v225
        %v567 = vpop.permute.xlu0 %566
        %v570 = vsel %vm430, %v549, 0
        %v573 = vsel %vm430, %v550, 0
        %v576 = vsel %vm430, %v551, 0
        %v579 = vsel %vm430, %v552, 0
        %581 = vmatprep.subr.mxu0 0.0
        %582 = vmatpush1.msra.mxu0 %v544
        %583 = vmatprep.subr.mxu0 0.0
        %584 = vmatpush1.msra.mxu0 %v545
        %585 = vmatprep.subr.mxu0 0.0
        %586 = vmatpush1.msra.mxu0 %v546
        %587 = vmatprep.subr.mxu0 0.0
        %588 = vmatpush1.msra.mxu0 %v547
        %589 = vmatprep.subr.mxu0 0.0
        %590 = vmatpush1.msra.mxu0 0.0
        %591 = vmatprep.subr.mxu0 0.0
        %592 = vmatpush1.msra.mxu0 0.0
        %593 = vmatprep.subr.mxu0 0.0
        %594 = vmatpush1.msra.mxu0 0.0
        %595 = vmatprep.subr.mxu0 0.0
        %596 = vmatpush1.msra.mxu0 0.0
        %597 = vmatprep.subr.mxu0 0.0
        %598 = vmatpush1.msra.mxu0 0.0
        %599 = vmatprep.subr.mxu0 0.0
        %600 = vmatpush1.msra.mxu0 0.0
        %601 = vmatprep.subr.mxu0 0.0
        %602 = vmatpush1.msra.mxu0 0.0
        %603 = vmatprep.subr.mxu0 0.0
        %604 = vmatpush1.msra.mxu0 0.0
        %605 = vmatprep.subr.mxu0 0.0
        %606 = vmatpush1.msra.mxu0 0.0
        %607 = vmatprep.subr.mxu0 0.0
        %608 = vmatpush1.msra.mxu0 0.0
        %609 = vmatprep.subr.mxu0 0.0
        %610 = vmatpush1.msra.mxu0 0.0
        %611 = vmatprep.subr.mxu0 0.0
        %612 = vmatpush1.msra.mxu0 0.0
        %613 = vmatprep.subr.mxu0 0.0
        %614 = vmatpush1.msra.mxu0 0.0
        %615 = vmatprep.subr.mxu0 0.0
        %616 = vmatpush1.msra.mxu0 0.0
        %617 = vmatprep.subr.mxu0 0.0
        %618 = vmatpush1.msra.mxu0 0.0
        %619 = vmatprep.subr.mxu0 0.0
        %620 = vmatpush1.msra.mxu0 0.0
        %621 = vmatprep.subr.mxu0 0.0
        %622 = vmatpush1.msra.mxu0 0.0
        %623 = vmatprep.subr.mxu0 0.0
        %624 = vmatpush1.msra.mxu0 0.0
        %625 = vmatprep.subr.mxu0 0.0
        %626 = vmatpush1.msra.mxu0 0.0
        %627 = vmatprep.subr.mxu0 0.0
        %628 = vmatpush1.msra.mxu0 0.0
        %629 = vmatprep.subr.mxu0 0.0
        %630 = vmatpush1.msra.mxu0 0.0
        %631 = vmatprep.subr.mxu0 0.0
        %632 = vmatpush1.msra.mxu0 0.0
        %633 = vmatprep.subr.mxu0 0.0
        %634 = vmatpush1.msra.mxu0 0.0
        %635 = vmatprep.subr.mxu0 0.0
        %636 = vmatpush1.msra.mxu0 0.0
        %637 = vmatprep.subr.mxu0 0.0
        %638 = vmatpush1.msra.mxu0 0.0
        %639 = vmatprep.subr.mxu0 0.0
        %640 = vmatpush1.msra.mxu0 0.0
        %641 = vmatprep.subr.mxu0 0.0
        %642 = vmatpush1.msra.mxu0 0.0
        %643 = vmatprep.subr.mxu0 0.0
        %644 = vmatpush1.msra.mxu0 0.0
        %645 = vmatprep.mubr.f32.mxu0 0.0
        %646 = vmatmul.mubr.f32.gmra.mrb[0].mxu0 %v570
        %v647 = vpop.f32.mrb[0].mxu0
        %v648 = vadd.f32 %v555, %v647
        %v649 = vpop.f32.mrb[0].mxu0
        %650 = vmatprep.mubr.f32.mxu0 0.0
        %651 = vmatmul.mubr.f32.gmra.mrb[0].mxu0 %v573
        %v652 = vpop.f32.mrb[0].mxu0
        %v653 = vadd.f32 %v559, %v652
        %v654 = vpop.f32.mrb[0].mxu0
        %655 = vmatprep.mubr.f32.mxu0 0.0
        %656 = vmatmul.mubr.f32.gmra.mrb[0].mxu0 %v576
        %v657 = vpop.f32.mrb[0].mxu0
        %v658 = vadd.f32 %v563, %v657
        %v659 = vpop.f32.mrb[0].mxu0
        %660 = vmatprep.mubr.f32.mxu0 0.0
        %661 = vmatmul.mubr.f32.gmra.mrb[0].mxu0 %v579
        %v662 = vpop.f32.mrb[0].mxu0
        %v663 = vadd.f32 %v567, %v662
        %v664 = vpop.f32.mrb[0].mxu0
        %665 = vdwg.mxu0
        %v666 = vmul.f32 %v648, 0.5
        %v667 = vmul.f32 %v653, 0.5
        %v668 = vmul.f32 %v658, 0.5
        %v669 = vmul.f32 %v663, 0.5
        %v670 = vmul.f32 %v648, 0.70710677
        %v671 = vmul.f32 %v653, 0.70710677
        %v672 = vmul.f32 %v658, 0.70710677
        %v673 = vmul.f32 %v663, 0.70710677
        %v674 = verf.f32.pop %v670
        %v675 = verf.f32.pop %v671
        %v676 = verf.f32.pop %v672
        %v677 = verf.f32.pop %v673
        %v678 = vadd.f32 %v674, 1.0
        %v679 = vadd.f32 %v675, 1.0
        %v680 = vadd.f32 %v676, 1.0
        %v681 = vadd.f32 %v677, 1.0
        %v682 = vmul.f32 %v666, %v678
        %v683 = vmul.f32 %v667, %v679
        %v684 = vmul.f32 %v668, %v680
        %v685 = vmul.f32 %v669, %v681
        %s686 = scalar_lea.vmem %s1, 64
        %v687 = vld [vmem:[%s686] sm:$0xff]
        %v688 = vld [vmem:[%s686 + $0x8] sm:$0xff]
        %v689 = vld [vmem:[%s686 + $0x10] sm:$0xff]
        %v690 = vld [vmem:[%s686 + $0x18] sm:$0xff]
        %691 = vset.pattern.permute.xlu0 7
        %692 = vperm.xlu0 %691, %v222
        %v693 = vpop.permute.xlu0 %692
        %695 = vset.pattern.permute.xlu0 7
        %696 = vperm.xlu0 %695, %v223
        %v697 = vpop.permute.xlu0 %696
        %699 = vset.pattern.permute.xlu0 7
        %700 = vperm.xlu0 %699, %v224
        %v701 = vpop.permute.xlu0 %700
        %703 = vset.pattern.permute.xlu0 7
        %704 = vperm.xlu0 %703, %v225
        %v705 = vpop.permute.xlu0 %704
        %v708 = vsel %vm430, %v687, 0
        %v711 = vsel %vm430, %v688, 0
        %v714 = vsel %vm430, %v689, 0
        %v717 = vsel %vm430, %v690, 0
        %719 = vmatprep.subr.mxu0 0.0
        %720 = vmatpush1.msra.mxu0 %v682
        %721 = vmatprep.subr.mxu0 0.0
        %722 = vmatpush1.msra.mxu0 %v683
        %723 = vmatprep.subr.mxu0 0.0
        %724 = vmatpush1.msra.mxu0 %v684
        %725 = vmatprep.subr.mxu0 0.0
        %726 = vmatpush1.msra.mxu0 %v685
        %727 = vmatprep.subr.mxu0 0.0
        %728 = vmatpush1.msra.mxu0 0.0
        %729 = vmatprep.subr.mxu0 0.0
        %730 = vmatpush1.msra.mxu0 0.0
        %731 = vmatprep.subr.mxu0 0.0
        %732 = vmatpush1.msra.mxu0 0.0
        %733 = vmatprep.subr.mxu0 0.0
        %734 = vmatpush1.msra.mxu0 0.0
        %735 = vmatprep.subr.mxu0 0.0
        %736 = vmatpush1.msra.mxu0 0.0
        %737 = vmatprep.subr.mxu0 0.0
        %738 = vmatpush1.msra.mxu0 0.0
        %739 = vmatprep.subr.mxu0 0.0
        %740 = vmatpush1.msra.mxu0 0.0
        %741 = vmatprep.subr.mxu0 0.0
        %742 = vmatpush1.msra.mxu0 0.0
        %743 = vmatprep.subr.mxu0 0.0
        %744 = vmatpush1.msra.mxu0 0.0
        %745 = vmatprep.subr.mxu0 0.0
        %746 = vmatpush1.msra.mxu0 0.0
        %747 = vmatprep.subr.mxu0 0.0
        %748 = vmatpush1.msra.mxu0 0.0
        %749 = vmatprep.subr.mxu0 0.0
        %750 = vmatpush1.msra.mxu0 0.0
        %751 = vmatprep.subr.mxu0 0.0
        %752 = vmatpush1.msra.mxu0 0.0
        %753 = vmatprep.subr.mxu0 0.0
        %754 = vmatpush1.msra.mxu0 0.0
        %755 = vmatprep.subr.mxu0 0.0
        %756 = vmatpush1.msra.mxu0 0.0
        %757 = vmatprep.subr.mxu0 0.0
        %758 = vmatpush1.msra.mxu0 0.0
        %759 = vmatprep.subr.mxu0 0.0
        %760 = vmatpush1.msra.mxu0 0.0
        %761 = vmatprep.subr.mxu0 0.0
        %762 = vmatpush1.msra.mxu0 0.0
        %763 = vmatprep.subr.mxu0 0.0
        %764 = vmatpush1.msra.mxu0 0.0
        %765 = vmatprep.subr.mxu0 0.0
        %766 = vmatpush1.msra.mxu0 0.0
        %767 = vmatprep.subr.mxu0 0.0
        %768 = vmatpush1.msra.mxu0 0.0
        %769 = vmatprep.subr.mxu0 0.0
        %770 = vmatpush1.msra.mxu0 0.0
        %771 = vmatprep.subr.mxu0 0.0
        %772 = vmatpush1.msra.mxu0 0.0
        %773 = vmatprep.subr.mxu0 0.0
        %774 = vmatpush1.msra.mxu0 0.0
        %775 = vmatprep.subr.mxu0 0.0
        %776 = vmatpush1.msra.mxu0 0.0
        %777 = vmatprep.subr.mxu0 0.0
        %778 = vmatpush1.msra.mxu0 0.0
        %779 = vmatprep.subr.mxu0 0.0
        %780 = vmatpush1.msra.mxu0 0.0
        %781 = vmatprep.subr.mxu0 0.0
        %782 = vmatpush1.msra.mxu0 0.0
        %783 = vmatprep.mubr.f32.mxu0 0.0
        %784 = vmatmul.mubr.f32.gmra.mrb[0].mxu0 %v708
        %v785 = vpop.f32.mrb[0].mxu0
        %v786 = vadd.f32 %v693, %v785
        %v787 = vpop.f32.mrb[0].mxu0
        %788 = vmatprep.mubr.f32.mxu0 0.0
        %789 = vmatmul.mubr.f32.gmra.mrb[0].mxu0 %v711
        %v790 = vpop.f32.mrb[0].mxu0
        %v791 = vadd.f32 %v697, %v790
        %v792 = vpop.f32.mrb[0].mxu0
        %793 = vmatprep.mubr.f32.mxu0 0.0
        %794 = vmatmul.mubr.f32.gmra.mrb[0].mxu0 %v714
        %v795 = vpop.f32.mrb[0].mxu0
        %v796 = vadd.f32 %v701, %v795
        %v797 = vpop.f32.mrb[0].mxu0
        %798 = vmatprep.mubr.f32.mxu0 0.0
        %799 = vmatmul.mubr.f32.gmra.mrb[0].mxu0 %v717
        %v800 = vpop.f32.mrb[0].mxu0
        %v801 = vadd.f32 %v705, %v800
        %v802 = vpop.f32.mrb[0].mxu0
        %803 = vdwg.mxu0
        %v804 = vadd.f32 %v183, %v786
        %v805 = vadd.f32 %v184, %v791
        %v806 = vadd.f32 %v185, %v796
        %v807 = vadd.f32 %v186, %v801
        %vm808 = vcmask 130048
        %809 = vst.msk [vmem:[%s177] sm:$0xff] %vm808, %v804
        %810 = vst.msk [vmem:[%s177 + $0x8] sm:$0xff] %vm808, %v805
        %811 = vst.msk [vmem:[%s177 + $0x10] sm:$0xff] %vm808, %v806
        %812 = vst.msk [vmem:[%s177 + $0x18] sm:$0xff] %vm808, %v807
        %s813 = sand.u32 %s107, 1
        %s814 = scalar_lea.sflag [#allocation4], %s813
        %s815 = sand.u32 %s107, 1
        %s816 = smul.addr %s815, 32
        %s817 = scalar_lea.vmem [#allocation3], %s816
        // Predicated region
        $region33: #{block_forward.1} parent=31 // pred_check
          %p818 = pneg %p117
        $region34: #{block_forward.1} parent=31 // pred_check_branch
          %820 = sbr.rel (%p818) target = $region36
        $region35: #{block_forward.1} parent=31 // pred_region
          %s822 = ssub.s32 512, 512
          %823 = vsyncadd %s814, %s822
          %s824 = smul.addr %s21, 4
          %s825 = sadd.s32 %s22, %s824
          %s826 = smul.addr %s825, 128
          %s827 = scalar_lea.hbm %s3, %s826
          %s828 = sshll.u32 %s817, 4
          %s829 = int_to_ptr.vmem [resolvable:$true] %s828
          %834 = dma.vmem_to_hbm [thread:$0]  %s829, 512, %s827, %s814, 128, 128, 8
        $region36: #{block_forward.1} parent=31 // pred_fallthru
          _
      $region32: #{block_forward.1} parent=5 // pred_fallthru
        _
      %p835 = scmp.le.s32.totalorder 2, %s12
      // Predicated region
      $region37: #{block_forward.1} parent=5 // pred_check
        %p836 = pneg %p835
      $region38: #{block_forward.1} parent=5 // pred_check_branch
        %838 = sbr.rel (%p836) target = $region40
      $region39: #{block_forward.1} parent=5 // pred_region
        %s839 = ssub.s32 %s12, 2
        // Predicated region
        $region41: #{block_forward.1} parent=39 // pred_check
          %p840 = pneg %p123
        $region42: #{block_forward.1} parent=39 // pred_check_branch
          %842 = sbr.rel (%p840) target = $region44
        $region43: #{block_forward.1} parent=39 // pred_region
          %s843 = sand.u32 %s108, 1
          %s844 = scalar_lea.sflag [#allocation4], %s843
          %s845 = sand.u32 %s108, 1
          %s846 = smul.addr %s845, 32
          %s847 = scalar_lea.vmem [#allocation3], %s846
          %848 = dma.done %s844, 512
        $region44: #{block_forward.1} parent=39 // pred_fallthru
          _
      $region40: #{block_forward.1} parent=5 // pred_fallthru
        _
    $region6: #{block_forward.1} parent=1 // loop_footer
      %s16 = sadd.s32 1, %s12
    $region7: #{block_forward.1} parent=1 // loop_footer_branch
      %11 = sbr.rel target = $region3
    $region8: #{block_forward.1} parent=1 // loop_exit
      _
    %849 = vsyncpa [#allocation4], 1
    %s850 = scalar_lea.sflag [#allocation4], 1
    %851 = vsyncpa %s850, 1

</llo_original>
